<compile_context>
chip_gen: v5e
topology: v5e:2x2
jax: 0.10.0
libtpu: 0.0.40
codegen_flags: <defaults>
</compile_context>

<pallas_src>
import functools

import jax
import jax.numpy as jnp
import numpy as np
from jax.experimental import pallas as pl
from jax.experimental.pallas import tpu as pltpu

# ------------------------- model hyper-parameters -------------------------
D_MODEL = 32
NUM_HEAD = 4
D_FFN = 64
SEQ = 8
BATCH = 2
EPS = 1e-6


def _fast_recip(d):
    # EUP approximate reciprocal + one Newton-Raphson step: keeps divisions off
    # the VALU while retaining ~f32-level accuracy.
    r = pl.reciprocal(d, approx=True)
    return r * (2.0 - d * r)


# ------------------------------ Pallas kernel ------------------------------
def encoder_layer_kernel(x_ref, slab_ref, out_ref, *, num_head, d_ffn, eps):
    x = x_ref[...]                                   # (R, D) f32, R = nb*S
    R, D = x.shape
    dh = D // num_head

    # Static, 8-row-aligned offsets into the constant slab (must match
    # _build_slab on the host).
    off_wq = 0
    off_w1 = D
    off_w2 = 2 * D
    off_vec = 2 * D + d_ffn
    off_msk = off_vec + 8
    off_bias = off_msk + 8

    wq = slab_ref[off_wq:off_w1, 0:D]                # (D, D)
    w1 = slab_ref[off_w1:off_w2, 0:d_ffn]            # (D, d_ffn)
    w2 = slab_ref[off_w2:off_vec, 0:D]               # (d_ffn, D)
    vec = slab_ref[off_vec:off_msk, :]               # (8, width) small vectors
    bq = vec[0:1, 0:D]
    a1 = vec[1:2, 0:D]
    b1 = vec[2:3, 0:D]
    bf1 = vec[3:4, 0:d_ffn]
    bf2 = vec[4:5, 0:D]
    a2 = vec[5:6, 0:D]
    b2 = vec[6:7, 0:D]
    masks = slab_ref[off_msk:off_msk + num_head, 0:D]   # (H, D) 0/1 head masks
    bias = slab_ref[off_bias:off_bias + R, 0:R]         # (R, R) 0 / -1e30

    # Q = K = V = x @ Wq + bq  (reference bug: Wq used for all three; Wo unused)
    q = jnp.dot(x, wq, preferred_element_type=jnp.float32) + bq      # (R, D)

    # --- attention: heads via row-stacked masked copies (no lane shuffles) ---
    scale = 1.0 / float(np.sqrt(dh))
    q_s = q * scale                                                   # K-side scaling

    # Row block h of `qh_all` is q with all lanes outside head h zeroed.
    qh_all = jnp.concatenate(
        [q * masks[h:h + 1, :] for h in range(num_head)], axis=0)    # (H*R, D)

    # S[h*R + i, j] = <q_i, q_j> restricted to head-h lanes, pre-scaled.
    s = jax.lax.dot_general(qh_all, q_s, (((1,), (1,)), ((), ())),
                            preferred_element_type=jnp.float32)      # (H*R, R)
    # Static block-diagonal batch bias (0 within the same batch, -1e30 across).
    s = s + jnp.concatenate([bias] * num_head, axis=0)

    s = s - jnp.max(s, axis=-1, keepdims=True)
    p = jnp.exp(s)
    p = p * _fast_recip(jnp.sum(p, axis=-1, keepdims=True))

    o = jnp.dot(p, q, preferred_element_type=jnp.float32)            # (H*R, D)

    # Recombine heads: keep head-h lanes of row block h and sum (aligned
    # sublane slices + VPU masks, no lane concatenation).
    att = o[0:R, :] * masks[0:1, :]
    for h in range(1, num_head):
        att = att + o[h * R:(h + 1) * R, :] * masks[h:h + 1, :]

    # --- custom layer norm: (z - mean) / (std_unbiased + eps) * a + b ---
    inv_dm1 = 1.0 / float(D - 1)

    def laynorm(z, a, b):
        m = jnp.mean(z, axis=-1, keepdims=True)
        zc = z - m
        var = jnp.sum(zc * zc, axis=-1, keepdims=True) * inv_dm1
        return a * (zc * _fast_recip(jnp.sqrt(var) + eps)) + b

    h1 = laynorm(x + att, a1, b1)                                     # (R, D)

    # --- FFN: dense2(relu(dense1(h1))) ---
    f = jnp.dot(h1, w1, preferred_element_type=jnp.float32) + bf1
    f = jnp.maximum(f, 0.0)
    f = jnp.dot(f, w2, preferred_element_type=jnp.float32) + bf2

    out_ref[...] = laynorm(h1 + f, a2, b2).astype(out_ref.dtype)


# ------------------------------ host wrapper ------------------------------
def _build_slab(params, *, num_head, seq, rows, d_model, d_ffn):
    """Pack every constant into one row-stacked f32 slab (one DMA).

    Row layout (all section sizes multiples of 8, all data starts at lane 0):
      [0, D)              Wq        (D, D)
      [D, 2D)             W1        (D, d_ffn)
      [2D, 2D+d_ffn)      W2        (d_ffn, D)
      next 8 rows         bq,a1,b1,bf1,bf2,a2,b2,pad
      next 8 rows         head masks (num_head used)
      next `rows` rows    batch block-diag bias (rows, rows): 0 / -1e30
    """
    wq, bq, a1, b1, w1, bf1, w2, bf2, a2, b2 = params
    width = max(d_ffn, rows)

    def mat(a, r):
        a = jnp.asarray(a, jnp.float32)
        return jnp.pad(a, ((0, r - a.shape[0]), (0, width - a.shape[1])))

    def vec_row(v):
        v = jnp.ravel(jnp.asarray(v, jnp.float32))
        return jnp.pad(v, (0, width - v.shape[0]))

    vec_block = jnp.stack(
        [vec_row(bq), vec_row(a1), vec_row(b1), vec_row(bf1),
         vec_row(bf2), vec_row(a2), vec_row(b2),
         jnp.zeros((width,), jnp.float32)], axis=0)                   # (8, width)

    dh = d_model // num_head
    head_masks = np.zeros((8, width), np.float32)
    for h in range(num_head):
        head_masks[h, h * dh:(h + 1) * dh] = 1.0

    bias = np.full((rows, rows), -1e30, np.float32)
    for b in range(rows // seq):
        bias[b * seq:(b + 1) * seq, b * seq:(b + 1) * seq] = 0.0
    bias = np.pad(bias, ((0, 0), (0, width - rows)))

    return jnp.concatenate([
        mat(wq, d_model),
        mat(w1, d_model),
        mat(w2, d_ffn),
        vec_block,
        jnp.asarray(head_masks),
        jnp.asarray(bias),
    ], axis=0)


def encoder_layer(x, params, *, batches_per_step=None):
    B, S, D = x.shape
    d_ffn = params[4].shape[1]

    if batches_per_step is None:
        batches_per_step = B
        # v7x has two TensorCores per chip, but splitting only pays when the
        # per-core work beats the per-step overhead + duplicated constant DMAs
        # (review: only split at >= ~256 rows per core).
        try:
            kind = jax.devices()[0].device_kind.lower().replace(" ", "")
            if (("v7" in kind or "tpu7" in kind) and B % 2 == 0
                    and (B // 2) * S >= 256):
                batches_per_step = B // 2
        except Exception:
            pass
        # Re-blocking guard: the (H*rows, rows) score block grows quadratically
        # with rows/step, so cap it before it eats VMEM on larger problems.
        while batches_per_step * S > 1024 and batches_per_step % 2 == 0:
            batches_per_step //= 2

    assert B % batches_per_step == 0
    n_steps = B // batches_per_step
    rows = batches_per_step * S
    if n_steps > 1:
        assert rows % 8 == 0, "rows per grid step must be sublane aligned"

    slab = _build_slab(params, num_head=NUM_HEAD, seq=S, rows=rows,
                       d_model=D, d_ffn=d_ffn)
    x2 = x.reshape(B * S, D)

    kernel = functools.partial(encoder_layer_kernel, num_head=NUM_HEAD,
                               d_ffn=d_ffn, eps=EPS)

    out = pl.pallas_call(
        kernel,
        out_shape=jax.ShapeDtypeStruct((B * S, D), x.dtype),
        grid_spec=pltpu.PrefetchScalarGridSpec(
            num_scalar_prefetch=0,
            grid=(n_steps,),
            in_specs=[
                pl.BlockSpec((rows, D), lambda g: (g, 0)),    # x (flattened B*S)
                pl.BlockSpec(slab.shape, lambda g: (0, 0)),   # constant slab
            ],
            out_specs=pl.BlockSpec((rows, D), lambda g: (g, 0)),
        ),
        compiler_params=pltpu.CompilerParams(
            dimension_semantics=("parallel",)),
    )(x2, slab)
    return out.reshape(B, S, D)


# --------------------------- pure-JAX reference ---------------------------
def encoder_layer_ref(x, params):
    (wq, bq, a1, b1, w1, bf1, w2, bf2, a2, b2) = params
    B, S, D = x.shape
    H, dh = NUM_HEAD, D // NUM_HEAD
    q = x @ wq + bq
    k = q
    v = q
    qh = q.reshape(B, S, H, dh).transpose(0, 2, 1, 3)
    kh = k.reshape(B, S, H, dh).transpose(0, 2, 1, 3)
    vh = v.reshape(B, S, H, dh).transpose(0, 2, 1, 3)
    s = jnp.einsum("bhqd,bhkd->bhqk", qh, kh) / jnp.sqrt(jnp.float32(dh))
    p = jax.nn.softmax(s, axis=-1)
    o = jnp.einsum("bhqk,bhkd->bhqd", p, vh).transpose(0, 2, 1, 3).reshape(B, S, D)

    def ln(z, a, b):
        m = z.mean(-1, keepdims=True)
        std = jnp.sqrt(((z - m) ** 2).sum(-1, keepdims=True) / (D - 1))
        return a * (z - m) / (std + EPS) + b

    h = ln(x + o, a1, b1)
    f = jnp.maximum(h @ w1 + bf1, 0.0) @ w2 + bf2
    return ln(h + f, a2, b2)


# ------------------------------- parameters -------------------------------
def init_params(key):
    ks = jax.random.split(key, 8)

    def lin(k, fan_in, shape):
        bound = 1.0 / np.sqrt(fan_in)
        return jax.random.uniform(k, shape, jnp.float32, -bound, bound)

    wq = lin(ks[0], D_MODEL, (D_MODEL, D_MODEL))
    bq = lin(ks[1], D_MODEL, (1, D_MODEL))
    w1 = lin(ks[2], D_MODEL, (D_MODEL, D_FFN))
    bf1 = lin(ks[3], D_MODEL, (1, D_FFN))
    w2 = lin(ks[4], D_FFN, (D_FFN, D_MODEL))
    bf2 = lin(ks[5], D_FFN, (1, D_MODEL))
    a1 = jax.random.uniform(ks[6], (1, D_MODEL), jnp.float32)   # torch.rand
    b1 = jnp.zeros((1, D_MODEL), jnp.float32)
    a2 = jax.random.uniform(ks[7], (1, D_MODEL), jnp.float32)
    b2 = jnp.zeros((1, D_MODEL), jnp.float32)
    return (wq, bq, a1, b1, w1, bf1, w2, bf2, a2, b2)


if __name__ == "__main__":
    key = jax.random.PRNGKey(0)
    k_x, k_p = jax.random.split(key)
    x = jax.random.normal(k_x, (BATCH, SEQ, D_MODEL), jnp.float32)
    params = init_params(k_p)

    out = jax.block_until_ready(encoder_layer(x, params))
    ref = jax.block_until_ready(encoder_layer_ref(x, params))

    # Tolerance slightly above 1e-4: the EUP approx-reciprocal + one NR step is
    # accurate to ~1e-5 relative; everything else is exact f32.
    np.testing.assert_allclose(np.asarray(out), np.asarray(ref),
                               rtol=2e-4, atol=2e-4)
    print("KERNEL_OK")
</pallas_src>

<mosaic_0001>
module attributes {stable_mosaic.version = 11 : i64} {
  func.func @encoder_layer_kernel(%arg0: i32, %arg1: memref<16x32xf32, #tpu.memory_space<vmem>>, %arg2: memref<160x64xf32, #tpu.memory_space<vmem>>, %arg3: memref<16x32xf32, #tpu.memory_space<vmem>>) attributes {dimension_semantics = [#tpu.dimension_semantics<parallel>], iteration_bounds = array<i64: 1>, scalar_prefetch = 0 : i64, scratch_operands = 0 : i64, tpu.core_type = #tpu.core_type<tc>, window_params = [{transform_indices = @transform_0, window_bounds = array<i64: 16, 32>}, {pipeline_mode = #tpu.pipeline_mode<synchronous>, transform_indices = @transform_1, window_bounds = array<i64: 160, 64>}, {transform_indices = @transform_2, window_bounds = array<i64: 16, 32>}]} {
    %c0 = arith.constant 0 : index
    %c0_0 = arith.constant 0 : index
    %0 = vector.load %arg1[%c0, %c0_0] : memref<16x32xf32, #tpu.memory_space<vmem>>, vector<16x32xf32>
    %c0_1 = arith.constant 0 : index
    %c0_2 = arith.constant 0 : index
    %1 = vector.load %arg2[%c0_1, %c0_2] : memref<160x64xf32, #tpu.memory_space<vmem>>, vector<32x32xf32>
    %c32 = arith.constant 32 : index
    %c0_3 = arith.constant 0 : index
    %2 = vector.load %arg2[%c32, %c0_3] : memref<160x64xf32, #tpu.memory_space<vmem>>, vector<32x64xf32>
    %c64 = arith.constant 64 : index
    %c0_4 = arith.constant 0 : index
    %3 = vector.load %arg2[%c64, %c0_4] : memref<160x64xf32, #tpu.memory_space<vmem>>, vector<64x32xf32>
    %c128 = arith.constant 128 : index
    %c0_5 = arith.constant 0 : index
    %4 = vector.load %arg2[%c128, %c0_5] : memref<160x64xf32, #tpu.memory_space<vmem>>, vector<8x64xf32>
    %5 = vector.extract_strided_slice %4 {offsets = [0, 0], sizes = [1, 32], strides = [1, 1]} : vector<8x64xf32> to vector<1x32xf32>
    %6 = vector.extract_strided_slice %4 {offsets = [1, 0], sizes = [1, 32], strides = [1, 1]} : vector<8x64xf32> to vector<1x32xf32>
    %7 = vector.extract_strided_slice %4 {offsets = [2, 0], sizes = [1, 32], strides = [1, 1]} : vector<8x64xf32> to vector<1x32xf32>
    %8 = vector.extract_strided_slice %4 {offsets = [3, 0], sizes = [1, 64], strides = [1, 1]} : vector<8x64xf32> to vector<1x64xf32>
    %9 = vector.extract_strided_slice %4 {offsets = [4, 0], sizes = [1, 32], strides = [1, 1]} : vector<8x64xf32> to vector<1x32xf32>
    %10 = vector.extract_strided_slice %4 {offsets = [5, 0], sizes = [1, 32], strides = [1, 1]} : vector<8x64xf32> to vector<1x32xf32>
    %11 = vector.extract_strided_slice %4 {offsets = [6, 0], sizes = [1, 32], strides = [1, 1]} : vector<8x64xf32> to vector<1x32xf32>
    %c136 = arith.constant 136 : index
    %c0_6 = arith.constant 0 : index
    %12 = vector.load %arg2[%c136, %c0_6] : memref<160x64xf32, #tpu.memory_space<vmem>>, vector<4x32xf32>
    %c144 = arith.constant 144 : index
    %c0_7 = arith.constant 0 : index
    %13 = vector.load %arg2[%c144, %c0_7] : memref<160x64xf32, #tpu.memory_space<vmem>>, vector<16x16xf32>
    %cst = arith.constant dense<0.000000e+00> : vector<16x32xf32>
    %14 = tpu.matmul %0, %1, %cst {dimension_numbers = #tpu.dot_dimension_numbers<[1], [0], [0], [1], [0, 0, 1, 1], [], []>} : vector<16x32xf32>, vector<32x32xf32>, vector<16x32xf32> -> vector<16x32xf32>
    %15 = vector.broadcast %5 : vector<1x32xf32> to vector<16x32xf32>
    %16 = arith.addf %14, %15 : vector<16x32xf32>
    %cst_8 = arith.constant 0.353553385 : f32
    %17 = vector.broadcast %cst_8 : f32 to vector<16x32xf32>
    %18 = arith.mulf %16, %17 : vector<16x32xf32>
    %19 = vector.extract_strided_slice %12 {offsets = [0, 0], sizes = [1, 32], strides = [1, 1]} : vector<4x32xf32> to vector<1x32xf32>
    %20 = vector.broadcast %19 : vector<1x32xf32> to vector<16x32xf32>
    %21 = arith.mulf %16, %20 : vector<16x32xf32>
    %22 = vector.extract_strided_slice %12 {offsets = [1, 0], sizes = [1, 32], strides = [1, 1]} : vector<4x32xf32> to vector<1x32xf32>
    %23 = vector.broadcast %22 : vector<1x32xf32> to vector<16x32xf32>
    %24 = arith.mulf %16, %23 : vector<16x32xf32>
    %25 = vector.extract_strided_slice %12 {offsets = [2, 0], sizes = [1, 32], strides = [1, 1]} : vector<4x32xf32> to vector<1x32xf32>
    %26 = vector.broadcast %25 : vector<1x32xf32> to vector<16x32xf32>
    %27 = arith.mulf %16, %26 : vector<16x32xf32>
    %28 = vector.extract_strided_slice %12 {offsets = [3, 0], sizes = [1, 32], strides = [1, 1]} : vector<4x32xf32> to vector<1x32xf32>
    %29 = vector.broadcast %28 : vector<1x32xf32> to vector<16x32xf32>
    %30 = arith.mulf %16, %29 : vector<16x32xf32>
    %31 = tpu.concatenate %21, %24, %27, %30 in 0 : vector<16x32xf32>, vector<16x32xf32>, vector<16x32xf32>, vector<16x32xf32> -> vector<64x32xf32>
    %cst_9 = arith.constant dense<0.000000e+00> : vector<64x16xf32>
    %32 = tpu.matmul %31, %18, %cst_9 {dimension_numbers = #tpu.dot_dimension_numbers<[1], [1], [0], [0], [0, 0, 1, 0], [], []>} : vector<64x32xf32>, vector<16x32xf32>, vector<64x16xf32> -> vector<64x16xf32>
    %33 = tpu.concatenate %13, %13, %13, %13 in 0 : vector<16x16xf32>, vector<16x16xf32>, vector<16x16xf32>, vector<16x16xf32> -> vector<64x16xf32>
    %34 = arith.addf %32, %33 : vector<64x16xf32>
    %cst_10 = arith.constant dense<0xFF800000> : vector<64xf32>
    %35 = vector.multi_reduction <maximumf>, %34, %cst_10 [1] : vector<64x16xf32> to vector<64xf32>
    %36 = vector.shape_cast %35 : vector<64xf32> to vector<64x1xf32>
    %37 = vector.broadcast %36 : vector<64x1xf32> to vector<64x16xf32>
    %38 = arith.subf %34, %37 : vector<64x16xf32>
    %39 = math.exp %38 : vector<64x16xf32>
    %cst_11 = arith.constant dense<0.000000e+00> : vector<64xf32>
    %40 = vector.multi_reduction <add>, %39, %cst_11 [1] : vector<64x16xf32> to vector<64xf32>
    %41 = vector.shape_cast %40 : vector<64xf32> to vector<64x1xf32>
    %42 = tpu.reciprocal %41 {approx = true} : vector<64x1xf32> -> vector<64x1xf32>
    %43 = arith.mulf %41, %42 : vector<64x1xf32>
    %cst_12 = arith.constant 2.000000e+00 : f32
    %44 = vector.broadcast %cst_12 : f32 to vector<64x1xf32>
    %45 = arith.subf %44, %43 : vector<64x1xf32>
    %46 = arith.mulf %42, %45 : vector<64x1xf32>
    %47 = vector.broadcast %46 : vector<64x1xf32> to vector<64x16xf32>
    %48 = arith.mulf %39, %47 : vector<64x16xf32>
    %cst_13 = arith.constant dense<0.000000e+00> : vector<64x32xf32>
    %49 = tpu.matmul %48, %16, %cst_13 {dimension_numbers = #tpu.dot_dimension_numbers<[1], [0], [0], [1], [0, 0, 1, 1], [], []>} : vector<64x16xf32>, vector<16x32xf32>, vector<64x32xf32> -> vector<64x32xf32>
    %50 = vector.extract_strided_slice %49 {offsets = [0, 0], sizes = [16, 32], strides = [1, 1]} : vector<64x32xf32> to vector<16x32xf32>
    %51 = vector.extract_strided_slice %12 {offsets = [0, 0], sizes = [1, 32], strides = [1, 1]} : vector<4x32xf32> to vector<1x32xf32>
    %52 = vector.broadcast %51 : vector<1x32xf32> to vector<16x32xf32>
    %53 = arith.mulf %50, %52 : vector<16x32xf32>
    %54 = vector.extract_strided_slice %49 {offsets = [16, 0], sizes = [16, 32], strides = [1, 1]} : vector<64x32xf32> to vector<16x32xf32>
    %55 = vector.extract_strided_slice %12 {offsets = [1, 0], sizes = [1, 32], strides = [1, 1]} : vector<4x32xf32> to vector<1x32xf32>
    %56 = vector.broadcast %55 : vector<1x32xf32> to vector<16x32xf32>
    %57 = arith.mulf %54, %56 : vector<16x32xf32>
    %58 = arith.addf %53, %57 : vector<16x32xf32>
    %59 = vector.extract_strided_slice %49 {offsets = [32, 0], sizes = [16, 32], strides = [1, 1]} : vector<64x32xf32> to vector<16x32xf32>
    %60 = vector.extract_strided_slice %12 {offsets = [2, 0], sizes = [1, 32], strides = [1, 1]} : vector<4x32xf32> to vector<1x32xf32>
    %61 = vector.broadcast %60 : vector<1x32xf32> to vector<16x32xf32>
    %62 = arith.mulf %59, %61 : vector<16x32xf32>
    %63 = arith.addf %58, %62 : vector<16x32xf32>
    %64 = vector.extract_strided_slice %49 {offsets = [48, 0], sizes = [16, 32], strides = [1, 1]} : vector<64x32xf32> to vector<16x32xf32>
    %65 = vector.extract_strided_slice %12 {offsets = [3, 0], sizes = [1, 32], strides = [1, 1]} : vector<4x32xf32> to vector<1x32xf32>
    %66 = vector.broadcast %65 : vector<1x32xf32> to vector<16x32xf32>
    %67 = arith.mulf %64, %66 : vector<16x32xf32>
    %68 = arith.addf %63, %67 : vector<16x32xf32>
    %69 = arith.addf %0, %68 : vector<16x32xf32>
    %cst_14 = arith.constant dense<0.000000e+00> : vector<16xf32>
    %70 = vector.multi_reduction <add>, %69, %cst_14 [1] : vector<16x32xf32> to vector<16xf32>
    %71 = vector.shape_cast %70 : vector<16xf32> to vector<16x1xf32>
    %cst_15 = arith.constant 3.200000e+01 : f32
    %72 = vector.broadcast %cst_15 : f32 to vector<16x1xf32>
    %73 = arith.divf %71, %72 : vector<16x1xf32>
    %74 = vector.broadcast %73 : vector<16x1xf32> to vector<16x32xf32>
    %75 = arith.subf %69, %74 : vector<16x32xf32>
    %76 = arith.mulf %75, %75 : vector<16x32xf32>
    %cst_16 = arith.constant dense<0.000000e+00> : vector<16xf32>
    %77 = vector.multi_reduction <add>, %76, %cst_16 [1] : vector<16x32xf32> to vector<16xf32>
    %78 = vector.shape_cast %77 : vector<16xf32> to vector<16x1xf32>
    %cst_17 = arith.constant 0.0322580636 : f32
    %79 = vector.broadcast %cst_17 : f32 to vector<16x1xf32>
    %80 = arith.mulf %78, %79 : vector<16x1xf32>
    %81 = math.sqrt %80 : vector<16x1xf32>
    %cst_18 = arith.constant 9.99999997E-7 : f32
    %82 = vector.broadcast %cst_18 : f32 to vector<16x1xf32>
    %83 = arith.addf %81, %82 : vector<16x1xf32>
    %84 = tpu.reciprocal %83 {approx = true} : vector<16x1xf32> -> vector<16x1xf32>
    %85 = arith.mulf %83, %84 : vector<16x1xf32>
    %cst_19 = arith.constant 2.000000e+00 : f32
    %86 = vector.broadcast %cst_19 : f32 to vector<16x1xf32>
    %87 = arith.subf %86, %85 : vector<16x1xf32>
    %88 = arith.mulf %84, %87 : vector<16x1xf32>
    %89 = vector.broadcast %88 : vector<16x1xf32> to vector<16x32xf32>
    %90 = arith.mulf %75, %89 : vector<16x32xf32>
    %91 = vector.broadcast %6 : vector<1x32xf32> to vector<16x32xf32>
    %92 = arith.mulf %91, %90 : vector<16x32xf32>
    %93 = vector.broadcast %7 : vector<1x32xf32> to vector<16x32xf32>
    %94 = arith.addf %92, %93 : vector<16x32xf32>
    %cst_20 = arith.constant dense<0.000000e+00> : vector<16x64xf32>
    %95 = tpu.matmul %94, %2, %cst_20 {dimension_numbers = #tpu.dot_dimension_numbers<[1], [0], [0], [1], [0, 0, 1, 1], [], []>} : vector<16x32xf32>, vector<32x64xf32>, vector<16x64xf32> -> vector<16x64xf32>
    %96 = vector.broadcast %8 : vector<1x64xf32> to vector<16x64xf32>
    %97 = arith.addf %95, %96 : vector<16x64xf32>
    %cst_21 = arith.constant 0.000000e+00 : f32
    %98 = vector.broadcast %cst_21 : f32 to vector<16x64xf32>
    %99 = arith.maximumf %97, %98 : vector<16x64xf32>
    %cst_22 = arith.constant dense<0.000000e+00> : vector<16x32xf32>
    %100 = tpu.matmul %99, %3, %cst_22 {dimension_numbers = #tpu.dot_dimension_numbers<[1], [0], [0], [1], [0, 0, 1, 1], [], []>} : vector<16x64xf32>, vector<64x32xf32>, vector<16x32xf32> -> vector<16x32xf32>
    %101 = vector.broadcast %9 : vector<1x32xf32> to vector<16x32xf32>
    %102 = arith.addf %100, %101 : vector<16x32xf32>
    %103 = arith.addf %94, %102 : vector<16x32xf32>
    %cst_23 = arith.constant dense<0.000000e+00> : vector<16xf32>
    %104 = vector.multi_reduction <add>, %103, %cst_23 [1] : vector<16x32xf32> to vector<16xf32>
    %105 = vector.shape_cast %104 : vector<16xf32> to vector<16x1xf32>
    %cst_24 = arith.constant 3.200000e+01 : f32
    %106 = vector.broadcast %cst_24 : f32 to vector<16x1xf32>
    %107 = arith.divf %105, %106 : vector<16x1xf32>
    %108 = vector.broadcast %107 : vector<16x1xf32> to vector<16x32xf32>
    %109 = arith.subf %103, %108 : vector<16x32xf32>
    %110 = arith.mulf %109, %109 : vector<16x32xf32>
    %cst_25 = arith.constant dense<0.000000e+00> : vector<16xf32>
    %111 = vector.multi_reduction <add>, %110, %cst_25 [1] : vector<16x32xf32> to vector<16xf32>
    %112 = vector.shape_cast %111 : vector<16xf32> to vector<16x1xf32>
    %cst_26 = arith.constant 0.0322580636 : f32
    %113 = vector.broadcast %cst_26 : f32 to vector<16x1xf32>
    %114 = arith.mulf %112, %113 : vector<16x1xf32>
    %115 = math.sqrt %114 : vector<16x1xf32>
    %cst_27 = arith.constant 9.99999997E-7 : f32
    %116 = vector.broadcast %cst_27 : f32 to vector<16x1xf32>
    %117 = arith.addf %115, %116 : vector<16x1xf32>
    %118 = tpu.reciprocal %117 {approx = true} : vector<16x1xf32> -> vector<16x1xf32>
    %119 = arith.mulf %117, %118 : vector<16x1xf32>
    %cst_28 = arith.constant 2.000000e+00 : f32
    %120 = vector.broadcast %cst_28 : f32 to vector<16x1xf32>
    %121 = arith.subf %120, %119 : vector<16x1xf32>
    %122 = arith.mulf %118, %121 : vector<16x1xf32>
    %123 = vector.broadcast %122 : vector<16x1xf32> to vector<16x32xf32>
    %124 = arith.mulf %109, %123 : vector<16x32xf32>
    %125 = vector.broadcast %10 : vector<1x32xf32> to vector<16x32xf32>
    %126 = arith.mulf %125, %124 : vector<16x32xf32>
    %127 = vector.broadcast %11 : vector<1x32xf32> to vector<16x32xf32>
    %128 = arith.addf %126, %127 : vector<16x32xf32>
    %c0_29 = arith.constant 0 : index
    %c0_30 = arith.constant 0 : index
    %129 = vector.load %arg3[%c0_29, %c0_30] : memref<16x32xf32, #tpu.memory_space<vmem>>, vector<16x32xf32>
    tpu.vector_store %arg3[%c0_29, %c0_30], %128 {strides = array<i32>} : memref<16x32xf32, #tpu.memory_space<vmem>>, vector<16x32xf32>,
    return
  }
  func.func @transform_0(%arg0: i32) -> (i32, i32) {
    %c0_i32 = arith.constant 0 : i32
    %c0_i32_0 = arith.constant 0 : i32
    return %arg0, %c0_i32 : i32, i32
  }
  func.func @transform_1(%arg0: i32) -> (i32, i32) {
    %c0_i32 = arith.constant 0 : i32
    %c0_i32_0 = arith.constant 0 : i32
    %c0_i32_1 = arith.constant 0 : i32
    return %c0_i32, %c0_i32_0 : i32, i32
  }
  func.func @transform_2(%arg0: i32) -> (i32, i32) {
    %c0_i32 = arith.constant 0 : i32
    %c0_i32_0 = arith.constant 0 : i32
    return %arg0, %c0_i32 : i32, i32
  }
}

</mosaic_0001>

<llo_original>
// kernel: tpu_custom_call.1
$region0: #{tpu_custom_call.1}
  #allocation0 [shape = 'u32[]', space=smem, size = 0x4, offset = 0x4, fixed_abs, tag = 'smem constant byte address 0x4 - core index']
  #allocation1 [shape = 'u32[72,128]{1,0:T(1,128)}', space=vmem, size = 0x9000, scoped, tag = 'internal scratch']
  %s0 = inlined_call_operand.vmem [shape: f32[16,32], index: 0, kind: input, shape index: {}]
  %s1 = inlined_call_operand.vmem [shape: f32[160,64], index: 1, kind: input, shape index: {}]
  %s2 = inlined_call_operand.hbm [shape: f32[16,32], index: 2, kind: output, shape index: {}]
  %s3 = sld [smem:[#allocation0]]
  $region18: #{tpu_custom_call.1} parent=0
    _
  %s5 = ssub.s32 1, %s3
  %s6 = scalar_select 0, %s5, %s3
  $region1: #{tpu_custom_call.1} parent=0
    #allocation2 [shape = 'u8[8192]{0}', space=vmem, size = 0x2000, scoped, tag = 'output window, operand 0, single buffered']
    #allocation3 [shape = 's32[1]{0}', space=sflag, size = 0x4, scoped, tag = 'scoped memory for tpu_custom_call.1']
    %7 = vsyncpa [#allocation3], 0
    // Predicated region
    $region2: #{tpu_custom_call.1} parent=1 // pred_check
      _
    $region3: #{tpu_custom_call.1} parent=1 // pred_check_branch
      %9 = sbr.rel (0) target = $region5
    $region4: #{tpu_custom_call.1} parent=1 // pred_region
      _
    $region5: #{tpu_custom_call.1} parent=1 // pred_fallthru
      _
    // Predicated region
    $region6: #{tpu_custom_call.1} parent=1 // pred_check
      _
    $region7: #{tpu_custom_call.1} parent=1 // pred_check_branch
      %11 = sbr.rel (0) target = $region9
    $region8: #{tpu_custom_call.1} parent=1 // pred_region
      _
    $region9: #{tpu_custom_call.1} parent=1 // pred_fallthru
      _
    %v12 = vld [vmem:[%s0] sm:$0xff]
    %v13 = vld [vmem:[%s0 + $0x8] sm:$0xff]
    %v14 = vld [vmem:[%s1] sm:$0xff]
    %v15 = vld [vmem:[%s1 + $0x8] sm:$0xff]
    %v16 = vld [vmem:[%s1 + $0x10] sm:$0xff]
    %v17 = vld [vmem:[%s1 + $0x18] sm:$0xff]
    %v18 = vld [vmem:[%s1 + $0x20] sm:$0xff]
    %v19 = vld [vmem:[%s1 + $0x28] sm:$0xff]
    %v20 = vld [vmem:[%s1 + $0x30] sm:$0xff]
    %v21 = vld [vmem:[%s1 + $0x38] sm:$0xff]
    %v22 = vld [vmem:[%s1 + $0x40] sm:$0xff]
    %v23 = vld [vmem:[%s1 + $0x48] sm:$0xff]
    %v24 = vld [vmem:[%s1 + $0x50] sm:$0xff]
    %v25 = vld [vmem:[%s1 + $0x58] sm:$0xff]
    %v26 = vld [vmem:[%s1 + $0x60] sm:$0xff]
    %v27 = vld [vmem:[%s1 + $0x68] sm:$0xff]
    %v28 = vld [vmem:[%s1 + $0x70] sm:$0xff]
    %v29 = vld [vmem:[%s1 + $0x78] sm:$0xff]
    %v30 = vld [vmem:[%s1 + $0x80] sm:$0xff]
    %v31 = vld [vmem:[%s1 + $0x88] sm:$0xf]
    %v32 = vld [vmem:[%s1 + $0x90] sm:$0xff]
    %v33 = vld [vmem:[%s1 + $0x98] sm:$0xff]
    %v34 = vperm.slane %v30, 0
    %vm35 = vcmask 261120
    %v37 = vsel %vm35, %v12, 0
    %v40 = vsel %vm35, %v13, 0
    %42 = vmatpush.msra.mxu0 0.0
    %43 = vmatpush.msra.mxu0 0.0
    %44 = vmatpush.msra.mxu0 0.0
    %45 = vmatpush.msra.mxu0 0.0
    %46 = vmatpush.msra.mxu0 0.0
    %47 = vmatpush.msra.mxu0 0.0
    %48 = vmatpush.msra.mxu0 0.0
    %49 = vmatpush.msra.mxu0 0.0
    %50 = vmatpush.msra.mxu0 0.0
    %51 = vmatpush.msra.mxu0 0.0
    %52 = vmatpush.msra.mxu0 0.0
    %53 = vmatpush.msra.mxu0 0.0
    %54 = vmatpush.msra.mxu0 %v17
    %55 = vmatpush.msra.mxu0 %v16
    %56 = vmatpush.msra.mxu0 %v15
    %57 = vmatpush.msra.mxu0 %v14
    %58 = vmatmul.f32.gmra.mxu0 %v37
    %v59 = vpop.f32.mrf.mxu0
    %v60 = vadd.f32 %v34, %v59
    %61 = vmatmul.f32.gmra.mxu0 %v40
    %v62 = vpop.f32.mrf.mxu0
    %v63 = vadd.f32 %v34, %v62
    %64 = vdwg.mxu0
    %v65 = vmul.f32 %v60, 0.35355338
    %v66 = vmul.f32 %v63, 0.35355338
    %v67 = vperm.slane %v31, 0
    %v68 = vmul.f32 %v60, %v67
    %v69 = vmul.f32 %v63, %v67
    %v70 = vperm.slane %v31, 1
    %v71 = vmul.f32 %v60, %v70
    %v72 = vmul.f32 %v63, %v70
    %v73 = vperm.slane %v31, 2
    %v74 = vmul.f32 %v60, %v73
    %v75 = vmul.f32 %v63, %v73
    %v76 = vperm.slane %v31, 3
    %v77 = vmul.f32 %v60, %v76
    %v78 = vmul.f32 %v63, %v76
    %v80 = vsel %vm35, %v68, 0
    %v83 = vsel %vm35, %v69, 0
    %v86 = vsel %vm35, %v71, 0
    %v89 = vsel %vm35, %v72, 0
    %v92 = vsel %vm35, %v74, 0
    %v95 = vsel %vm35, %v75, 0
    %v98 = vsel %vm35, %v77, 0
    %v101 = vsel %vm35, %v78, 0
    %v104 = vsel %vm35, %v65, 0
    %v107 = vsel %vm35, %v66, 0
    %109 = vmatpush.xpose.msra.mxu0 0.0
    %110 = vmatpush.xpose.msra.mxu0 0.0
    %111 = vmatpush.xpose.msra.mxu0 0.0
    %112 = vmatpush.xpose.msra.mxu0 0.0
    %113 = vmatpush.xpose.msra.mxu0 0.0
    %114 = vmatpush.xpose.msra.mxu0 0.0
    %115 = vmatpush.xpose.msra.mxu0 0.0
    %116 = vmatpush.xpose.msra.mxu0 0.0
    %117 = vmatpush.xpose.msra.mxu0 0.0
    %118 = vmatpush.xpose.msra.mxu0 0.0
    %119 = vmatpush.xpose.msra.mxu0 0.0
    %120 = vmatpush.xpose.msra.mxu0 0.0
    %121 = vmatpush.xpose.msra.mxu0 0.0
    %122 = vmatpush.xpose.msra.mxu0 0.0
    %123 = vmatpush.xpose.msra.mxu0 %v107
    %124 = vmatpush.xpose.msra.mxu0 %v104
    %125 = vmatmul.f32.gmra.mxu0 %v80
    %v126 = vpop.f32.mrf.mxu0
    %v127 = vadd.f32 %v32, %v126
    %128 = vmatmul.f32.gmra.mxu0 %v83
    %v129 = vpop.f32.mrf.mxu0
    %v130 = vadd.f32 %v33, %v129
    %131 = vmatmul.f32.gmra.mxu0 %v86
    %v132 = vpop.f32.mrf.mxu0
    %v133 = vadd.f32 %v32, %v132
    %134 = vmatmul.f32.gmra.mxu0 %v89
    %v135 = vpop.f32.mrf.mxu0
    %v136 = vadd.f32 %v33, %v135
    %137 = vmatmul.f32.gmra.mxu0 %v92
    %v138 = vpop.f32.mrf.mxu0
    %v139 = vadd.f32 %v32, %v138
    %140 = vmatmul.f32.gmra.mxu0 %v95
    %v141 = vpop.f32.mrf.mxu0
    %v142 = vadd.f32 %v33, %v141
    %143 = vmatmul.f32.gmra.mxu0 %v98
    %v144 = vpop.f32.mrf.mxu0
    %v145 = vadd.f32 %v32, %v144
    %146 = vmatmul.f32.gmra.mxu0 %v101
    %v147 = vpop.f32.mrf.mxu0
    %v148 = vadd.f32 %v33, %v147
    %149 = vdwg.mxu0
    %vm150 = vcmask 130048
    %v151 = vsel %vm150, %v127, -inf
    %152 = vmax.xlane.f32.xlu0 %v151
    %v153 = vpop.xlane.xlu0 %152
    %v154 = vsel %vm150, %v130, -inf
    %155 = vmax.xlane.f32.xlu0 %v154
    %v156 = vpop.xlane.xlu0 %155
    %v157 = vsel %vm150, %v133, -inf
    %158 = vmax.xlane.f32.xlu0 %v157
    %v159 = vpop.xlane.xlu0 %158
    %v160 = vsel %vm150, %v136, -inf
    %161 = vmax.xlane.f32.xlu0 %v160
    %v162 = vpop.xlane.xlu0 %161
    %v163 = vsel %vm150, %v139, -inf
    %164 = vmax.xlane.f32.xlu0 %v163
    %v165 = vpop.xlane.xlu0 %164
    %v166 = vsel %vm150, %v142, -inf
    %167 = vmax.xlane.f32.xlu0 %v166
    %v168 = vpop.xlane.xlu0 %167
    %v169 = vsel %vm150, %v145, -inf
    %170 = vmax.xlane.f32.xlu0 %v169
    %v171 = vpop.xlane.xlu0 %170
    %v172 = vsel %vm150, %v148, -inf
    %173 = vmax.xlane.f32.xlu0 %v172
    %v174 = vpop.xlane.xlu0 %173
    %v175 = vsub.f32 %v127, %v153
    %v176 = vsub.f32 %v130, %v156
    %v177 = vsub.f32 %v133, %v159
    %v178 = vsub.f32 %v136, %v162
    %v179 = vsub.f32 %v139, %v165
    %v180 = vsub.f32 %v142, %v168
    %v181 = vsub.f32 %v145, %v171
    %v182 = vsub.f32 %v148, %v174
    %v183 = vmul.f32 %v175, 1.442695
    %v184 = vpow.pop %v183
    %v185 = vmul.f32 %v176, 1.442695
    %v186 = vpow.pop %v185
    %v187 = vmul.f32 %v177, 1.442695
    %v188 = vpow.pop %v187
    %v189 = vmul.f32 %v178, 1.442695
    %v190 = vpow.pop %v189
    %v191 = vmul.f32 %v179, 1.442695
    %v192 = vpow.pop %v191
    %v193 = vmul.f32 %v180, 1.442695
    %v194 = vpow.pop %v193
    %v195 = vmul.f32 %v181, 1.442695
    %v196 = vpow.pop %v195
    %v197 = vmul.f32 %v182, 1.442695
    %v198 = vpow.pop %v197
    %v199 = vsel %vm150, %v184, 0.0
    %200 = vadd.xlane.f32.xlu0 %v199
    %v201 = vpop.xlane.xlu0 %200
    %v202 = vsel %vm150, %v186, 0.0
    %203 = vadd.xlane.f32.xlu0 %v202
    %v204 = vpop.xlane.xlu0 %203
    %v205 = vsel %vm150, %v188, 0.0
    %206 = vadd.xlane.f32.xlu0 %v205
    %v207 = vpop.xlane.xlu0 %206
    %v208 = vsel %vm150, %v190, 0.0
    %209 = vadd.xlane.f32.xlu0 %v208
    %v210 = vpop.xlane.xlu0 %209
    %v211 = vsel %vm150, %v192, 0.0
    %212 = vadd.xlane.f32.xlu0 %v211
    %v213 = vpop.xlane.xlu0 %212
    %v214 = vsel %vm150, %v194, 0.0
    %215 = vadd.xlane.f32.xlu0 %v214
    %v216 = vpop.xlane.xlu0 %215
    %v217 = vsel %vm150, %v196, 0.0
    %218 = vadd.xlane.f32.xlu0 %v217
    %v219 = vpop.xlane.xlu0 %218
    %v220 = vsel %vm150, %v198, 0.0
    %221 = vadd.xlane.f32.xlu0 %v220
    %v222 = vpop.xlane.xlu0 %221
    %v223 = vrcp.pop %v201
    %v224 = vrcp.pop %v204
    %v225 = vrcp.pop %v207
    %v226 = vrcp.pop %v210
    %v227 = vrcp.pop %v213
    %v228 = vrcp.pop %v216
    %v229 = vrcp.pop %v219
    %v230 = vrcp.pop %v222
    %v231 = vmul.f32 %v201, %v223
    %v232 = vmul.f32 %v204, %v224
    %v233 = vmul.f32 %v207, %v225
    %v234 = vmul.f32 %v210, %v226
    %v235 = vmul.f32 %v213, %v227
    %v236 = vmul.f32 %v216, %v228
    %v237 = vmul.f32 %v219, %v229
    %v238 = vmul.f32 %v222, %v230
    %v239 = vsub.f32 2.0, %v231
    %v240 = vsub.f32 2.0, %v232
    %v241 = vsub.f32 2.0, %v233
    %v242 = vsub.f32 2.0, %v234
    %v243 = vsub.f32 2.0, %v235
    %v244 = vsub.f32 2.0, %v236
    %v245 = vsub.f32 2.0, %v237
    %v246 = vsub.f32 2.0, %v238
    %v247 = vmul.f32 %v223, %v239
    %v248 = vmul.f32 %v224, %v240
    %v249 = vmul.f32 %v225, %v241
    %v250 = vmul.f32 %v226, %v242
    %v251 = vmul.f32 %v227, %v243
    %v252 = vmul.f32 %v228, %v244
    %v253 = vmul.f32 %v229, %v245
    %v254 = vmul.f32 %v230, %v246
    %v255 = vmul.f32 %v184, %v247
    %v256 = vmul.f32 %v186, %v248
    %v257 = vmul.f32 %v188, %v249
    %v258 = vmul.f32 %v190, %v250
    %v259 = vmul.f32 %v192, %v251
    %v260 = vmul.f32 %v194, %v252
    %v261 = vmul.f32 %v196, %v253
    %v262 = vmul.f32 %v198, %v254
    %v264 = vsel %vm150, %v255, 0
    %v267 = vsel %vm150, %v256, 0
    %v270 = vsel %vm150, %v257, 0
    %v273 = vsel %vm150, %v258, 0
    %v276 = vsel %vm150, %v259, 0
    %v279 = vsel %vm150, %v260, 0
    %v282 = vsel %vm150, %v261, 0
    %v285 = vsel %vm150, %v262, 0
    %287 = vmatpush.msra.mxu0 0.0
    %288 = vmatpush.msra.mxu0 0.0
    %289 = vmatpush.msra.mxu0 0.0
    %290 = vmatpush.msra.mxu0 0.0
    %291 = vmatpush.msra.mxu0 0.0
    %292 = vmatpush.msra.mxu0 0.0
    %293 = vmatpush.msra.mxu0 0.0
    %294 = vmatpush.msra.mxu0 0.0
    %295 = vmatpush.msra.mxu0 0.0
    %296 = vmatpush.msra.mxu0 0.0
    %297 = vmatpush.msra.mxu0 0.0
    %298 = vmatpush.msra.mxu0 0.0
    %299 = vmatpush.msra.mxu0 0.0
    %300 = vmatpush.msra.mxu0 0.0
    %301 = vmatpush.msra.mxu0 %v63
    %302 = vmatpush.msra.mxu0 %v60
    %303 = vmatmul.f32.gmra.mxu0 %v264
    %v304 = vpop.f32.mrf.mxu0
    %v305 = vadd.f32 0.0, %v304
    %306 = vmatmul.f32.gmra.mxu0 %v267
    %v307 = vpop.f32.mrf.mxu0
    %v308 = vadd.f32 0.0, %v307
    %309 = vmatmul.f32.gmra.mxu0 %v270
    %v310 = vpop.f32.mrf.mxu0
    %v311 = vadd.f32 0.0, %v310
    %312 = vmatmul.f32.gmra.mxu0 %v273
    %v313 = vpop.f32.mrf.mxu0
    %v314 = vadd.f32 0.0, %v313
    %315 = vmatmul.f32.gmra.mxu0 %v276
    %v316 = vpop.f32.mrf.mxu0
    %v317 = vadd.f32 0.0, %v316
    %318 = vmatmul.f32.gmra.mxu0 %v279
    %v319 = vpop.f32.mrf.mxu0
    %v320 = vadd.f32 0.0, %v319
    %321 = vmatmul.f32.gmra.mxu0 %v282
    %v322 = vpop.f32.mrf.mxu0
    %v323 = vadd.f32 0.0, %v322
    %324 = vmatmul.f32.gmra.mxu0 %v285
    %v325 = vpop.f32.mrf.mxu0
    %v326 = vadd.f32 0.0, %v325
    %327 = vdwg.mxu0
    %v328 = vmul.f32 %v305, %v67
    %v329 = vmul.f32 %v308, %v67
    %v330 = vmul.f32 %v311, %v70
    %v331 = vmul.f32 %v314, %v70
    %v332 = vadd.f32 %v328, %v330
    %v333 = vadd.f32 %v329, %v331
    %v334 = vmul.f32 %v317, %v73
    %v335 = vmul.f32 %v320, %v73
    %v336 = vadd.f32 %v332, %v334
    %v337 = vadd.f32 %v333, %v335
    %v338 = vmul.f32 %v323, %v76
    %v339 = vmul.f32 %v326, %v76
    %v340 = vadd.f32 %v336, %v338
    %v341 = vadd.f32 %v337, %v339
    %v342 = vadd.f32 %v12, %v340
    %v343 = vadd.f32 %v13, %v341
    %v344 = vsel %vm35, %v342, 0.0
    %345 = vadd.xlane.f32.xlu0 %v344
    %v346 = vpop.xlane.xlu0 %345
    %v347 = vsel %vm35, %v343, 0.0
    %348 = vadd.xlane.f32.xlu0 %v347
    %v349 = vpop.xlane.xlu0 %348
    %v350 = vrcp.pop 32.0
    %v351 = vmul.f32 32.0, %v350
    %v352 = vsub.f32 1.0, %v351
    %v353 = vmul.f32 %v350, %v352
    %v354 = vadd.f32 %v350, %v353
    %vm355 = vweird.f32 %v350
    %v356 = vsel %vm355, %v350, %v354
    %v357 = vmul.f32 %v346, %v356
    %v358 = vmul.f32 %v349, %v356
    %v359 = vsub.f32 %v342, %v357
    %v360 = vsub.f32 %v343, %v358
    %v361 = vmul.f32 %v359, %v359
    %v362 = vmul.f32 %v360, %v360
    %v363 = vsel %vm35, %v361, 0.0
    %364 = vadd.xlane.f32.xlu0 %v363
    %v365 = vpop.xlane.xlu0 %364
    %v366 = vsel %vm35, %v362, 0.0
    %367 = vadd.xlane.f32.xlu0 %v366
    %v368 = vpop.xlane.xlu0 %367
    %v369 = vmul.f32 %v365, 0.032258064
    %v370 = vmul.f32 %v368, 0.032258064
    %v371 = vrsqrt.pop %v369
    %v372 = vmul.f32 %v371, %v369
    %v373 = vmul.f32 %v372, %v371
    %v374 = vmul.f32 0.5, %v373
    %v375 = vsub.f32 1.5, %v374
    %v376 = vmul.f32 %v371, %v375
    %v377 = vmul.f32 %v369, %v376
    %vm378 = vcmp.eq.f32.partialorder %v369, inf
    %v379 = vsel %vm378, %v369, %v377
    %vm380 = vcmp.eq.f32.partialorder %v369, 0.0
    %v381 = vand.u32 %v369, 2147483648
    %v382 = vsel %vm380, %v381, %v379
    %v383 = vrsqrt.pop %v370
    %v384 = vmul.f32 %v383, %v370
    %v385 = vmul.f32 %v384, %v383
    %v386 = vmul.f32 0.5, %v385
    %v387 = vsub.f32 1.5, %v386
    %v388 = vmul.f32 %v383, %v387
    %v389 = vmul.f32 %v370, %v388
    %vm390 = vcmp.eq.f32.partialorder %v370, inf
    %v391 = vsel %vm390, %v370, %v389
    %vm392 = vcmp.eq.f32.partialorder %v370, 0.0
    %v393 = vand.u32 %v370, 2147483648
    %v394 = vsel %vm392, %v393, %v391
    %v395 = vadd.f32 %v382, 1e-06
    %v396 = vadd.f32 %v394, 1e-06
    %v397 = vrcp.pop %v395
    %v398 = vrcp.pop %v396
    %v399 = vmul.f32 %v395, %v397
    %v400 = vmul.f32 %v396, %v398
    %v401 = vsub.f32 2.0, %v399
    %v402 = vsub.f32 2.0, %v400
    %v403 = vmul.f32 %v397, %v401
    %v404 = vmul.f32 %v398, %v402
    %v405 = vmul.f32 %v359, %v403
    %v406 = vmul.f32 %v360, %v404
    %v407 = vperm.slane %v30, 1
    %v408 = vmul.f32 %v407, %v405
    %v409 = vmul.f32 %v407, %v406
    %v410 = vperm.slane %v30, 2
    %v411 = vadd.f32 %v408, %v410
    %v412 = vadd.f32 %v409, %v410
    %v413 = vperm.slane %v30, 3
    %v415 = vsel %vm35, %v411, 0
    %v418 = vsel %vm35, %v412, 0
    %420 = vmatpush.msra.mxu0 0.0
    %421 = vmatpush.msra.mxu0 0.0
    %422 = vmatpush.msra.mxu0 0.0
    %423 = vmatpush.msra.mxu0 0.0
    %424 = vmatpush.msra.mxu0 0.0
    %425 = vmatpush.msra.mxu0 0.0
    %426 = vmatpush.msra.mxu0 0.0
    %427 = vmatpush.msra.mxu0 0.0
    %428 = vmatpush.msra.mxu0 0.0
    %429 = vmatpush.msra.mxu0 0.0
    %430 = vmatpush.msra.mxu0 0.0
    %431 = vmatpush.msra.mxu0 0.0
    %432 = vmatpush.msra.mxu0 %v21
    %433 = vmatpush.msra.mxu0 %v20
    %434 = vmatpush.msra.mxu0 %v19
    %435 = vmatpush.msra.mxu0 %v18
    %436 = vmatmul.f32.gmra.mxu0 %v415
    %v437 = vpop.f32.mrf.mxu0
    %v438 = vadd.f32 %v413, %v437
    %439 = vmatmul.f32.gmra.mxu0 %v418
    %v440 = vpop.f32.mrf.mxu0
    %v441 = vadd.f32 %v413, %v440
    %442 = vdwg.mxu0
    %v443 = vmax.f32 %v438, 0.0
    %v444 = vmax.f32 %v441, 0.0
    %v445 = vperm.slane %v30, 4
    %vm446 = vcmask 523264
    %v448 = vsel %vm446, %v443, 0
    %v451 = vsel %vm446, %v444, 0
    %453 = vmatpush.msra.mxu0 0.0
    %454 = vmatpush.msra.mxu0 0.0
    %455 = vmatpush.msra.mxu0 0.0
    %456 = vmatpush.msra.mxu0 0.0
    %457 = vmatpush.msra.mxu0 0.0
    %458 = vmatpush.msra.mxu0 0.0
    %459 = vmatpush.msra.mxu0 0.0
    %460 = vmatpush.msra.mxu0 0.0
    %461 = vmatpush.msra.mxu0 %v29
    %462 = vmatpush.msra.mxu0 %v28
    %463 = vmatpush.msra.mxu0 %v27
    %464 = vmatpush.msra.mxu0 %v26
    %465 = vmatpush.msra.mxu0 %v25
    %466 = vmatpush.msra.mxu0 %v24
    %467 = vmatpush.msra.mxu0 %v23
    %468 = vmatpush.msra.mxu0 %v22
    %469 = vmatmul.f32.gmra.mxu0 %v448
    %v470 = vpop.f32.mrf.mxu0
    %v471 = vadd.f32 %v445, %v470
    %472 = vmatmul.f32.gmra.mxu0 %v451
    %v473 = vpop.f32.mrf.mxu0
    %v474 = vadd.f32 %v445, %v473
    %475 = vdwg.mxu0
    %v476 = vadd.f32 %v411, %v471
    %v477 = vadd.f32 %v412, %v474
    %v478 = vsel %vm35, %v476, 0.0
    %479 = vadd.xlane.f32.xlu0 %v478
    %v480 = vpop.xlane.xlu0 %479
    %v481 = vsel %vm35, %v477, 0.0
    %482 = vadd.xlane.f32.xlu0 %v481
    %v483 = vpop.xlane.xlu0 %482
    %v484 = vmul.f32 %v480, %v356
    %v485 = vmul.f32 %v483, %v356
    %v486 = vsub.f32 %v476, %v484
    %v487 = vsub.f32 %v477, %v485
    %v488 = vmul.f32 %v486, %v486
    %v489 = vmul.f32 %v487, %v487
    %v490 = vsel %vm35, %v488, 0.0
    %491 = vadd.xlane.f32.xlu0 %v490
    %v492 = vpop.xlane.xlu0 %491
    %v493 = vsel %vm35, %v489, 0.0
    %494 = vadd.xlane.f32.xlu0 %v493
    %v495 = vpop.xlane.xlu0 %494
    %v496 = vmul.f32 %v492, 0.032258064
    %v497 = vmul.f32 %v495, 0.032258064
    %v498 = vrsqrt.pop %v496
    %v499 = vmul.f32 %v498, %v496
    %v500 = vmul.f32 %v499, %v498
    %v501 = vmul.f32 0.5, %v500
    %v502 = vsub.f32 1.5, %v501
    %v503 = vmul.f32 %v498, %v502
    %v504 = vmul.f32 %v496, %v503
    %vm505 = vcmp.eq.f32.partialorder %v496, inf
    %v506 = vsel %vm505, %v496, %v504
    %vm507 = vcmp.eq.f32.partialorder %v496, 0.0
    %v508 = vand.u32 %v496, 2147483648
    %v509 = vsel %vm507, %v508, %v506
    %v510 = vrsqrt.pop %v497
    %v511 = vmul.f32 %v510, %v497
    %v512 = vmul.f32 %v511, %v510
    %v513 = vmul.f32 0.5, %v512
    %v514 = vsub.f32 1.5, %v513
    %v515 = vmul.f32 %v510, %v514
    %v516 = vmul.f32 %v497, %v515
    %vm517 = vcmp.eq.f32.partialorder %v497, inf
    %v518 = vsel %vm517, %v497, %v516
    %vm519 = vcmp.eq.f32.partialorder %v497, 0.0
    %v520 = vand.u32 %v497, 2147483648
    %v521 = vsel %vm519, %v520, %v518
    %v522 = vadd.f32 %v509, 1e-06
    %v523 = vadd.f32 %v521, 1e-06
    %v524 = vrcp.pop %v522
    %v525 = vrcp.pop %v523
    %v526 = vmul.f32 %v522, %v524
    %v527 = vmul.f32 %v523, %v525
    %v528 = vsub.f32 2.0, %v526
    %v529 = vsub.f32 2.0, %v527
    %v530 = vmul.f32 %v524, %v528
    %v531 = vmul.f32 %v525, %v529
    %v532 = vmul.f32 %v486, %v530
    %v533 = vmul.f32 %v487, %v531
    %v534 = vperm.slane %v30, 5
    %v535 = vmul.f32 %v534, %v532
    %v536 = vmul.f32 %v534, %v533
    %v537 = vperm.slane %v30, 6
    %v538 = vadd.f32 %v535, %v537
    %v539 = vadd.f32 %v536, %v537
    %540 = vst.msk [vmem:[#allocation2] sm:$0xff] %vm35, %v538
    %541 = vst.msk [vmem:[#allocation2 + $0x8] sm:$0xff] %vm35, %v539
    // Predicated region
    $region10: #{tpu_custom_call.1} parent=1 // pred_check
      _
    $region11: #{tpu_custom_call.1} parent=1 // pred_check_branch
      %543 = sbr.rel (0) target = $region13
    $region12: #{tpu_custom_call.1} parent=1 // pred_region
      %545 = vsyncadd [#allocation3], 0
      %s546 = sshll.u32 [#allocation2], 4
      %s547 = int_to_ptr.vmem [resolvable:$true] %s546
      %s548 = sshll.u32 %s2, 4
      %s549 = int_to_ptr.hbm [resolvable:$true] %s548
      %554 = dma.vmem_to_hbm [thread:$0]  %s547, 256, %s549, [#allocation3], 128, 128, 8
    $region13: #{tpu_custom_call.1} parent=1 // pred_fallthru
      _
    // Predicated region
    $region14: #{tpu_custom_call.1} parent=1 // pred_check
      _
    $region15: #{tpu_custom_call.1} parent=1 // pred_check_branch
      %556 = sbr.rel (0) target = $region17
    $region16: #{tpu_custom_call.1} parent=1 // pred_region
      %558 = dma.done [#allocation3], 256
    $region17: #{tpu_custom_call.1} parent=1 // pred_fallthru
      _
    %559 = vsyncpa [#allocation3], 1

</llo_original>
